<compile_context>
chip_gen: v5e
topology: v5e:2x2
jax: 0.10.0
libtpu: 0.0.40
codegen_flags: <defaults>
</compile_context>

<pallas_src>
import jax
import jax.numpy as jnp
from jax.experimental import pallas as pl
from jax.experimental.pallas import tpu as pltpu


# ----------------------------------------------------------------------------
# Fused kernel: out = (scale-1) * x@W.T + scale * (x@Vs.T)@Uo.T with the DoRA
# scale computed from the same W stream.
# ----------------------------------------------------------------------------
def _dora_fused_kernel(x_ref, w_ref, vs_ref, xv_ref, uoT_ref, mag_ref, quad_ref,
                       out_ref, acc_ref, g_ref, w2_ref):
    k = pl.program_id(2)

    @pl.when(k == 0)
    def _():
        acc_ref[...] = jnp.zeros_like(acc_ref)
        g_ref[...] = jnp.zeros_like(g_ref)
        w2_ref[...] = jnp.zeros_like(w2_ref)

    w = w_ref[...]

    # Base GEMM partial: x_tile @ W_tile^T (native-dtype MXU, f32 accumulate).
    acc_ref[...] += jax.lax.dot_general(
        x_ref[...], w, (((1,), (1,)), ((), ())),
        preferred_element_type=jnp.float32)

    # Norm cross-term partial: G += Vs_tile @ W_tile^T -> (R, TO).
    # M = R = 8, so this adds only a handful of MXU pushes per tile.
    g_ref[...] += jax.lax.dot_general(
        vs_ref[...], w, (((1,), (1,)), ((), ())),
        preferred_element_type=jnp.float32)

    # Norm ||W||^2 partial, kept lane-dense: ones(8,TK) @ (W^2)^T -> (8, TO)
    # (all 8 rows identical; row 0 is used in the epilogue).  M = 8 again, so
    # the only real cost is the VPU square, hidden under the base GEMM pushes.
    wf = w.astype(jnp.float32)
    ones_rows = jnp.ones((8, wf.shape[1]), jnp.float32)
    w2_ref[...] += jax.lax.dot_general(
        ones_rows, wf * wf, (((1,), (1,)), ((), ())),
        preferred_element_type=jnp.float32)

    @pl.when(k == pl.num_programs(2) - 1)
    def _():
        uoT = uoT_ref[...]                                           # (R, TO) f32
        # ||W + Uo Vs||^2_row = ||W||^2 + 2*sum_r Uo^T*G + Uo (Vs Vs^T) Uo^T
        cross = jnp.sum(uoT * g_ref[...], axis=0, keepdims=True)     # (1, TO)
        sumsq = w2_ref[0:1, :] + 2.0 * cross + quad_ref[...]         # (1, TO)
        # scale = magnitude / weight_norm (no epsilon, matching the reference).
        scale = mag_ref[...] * jax.lax.rsqrt(sumsq)                  # (1, TO)
        # Low-rank osora term finished once per (b, j): (TB,R)x(R,TO) in f32.
        osora = jax.lax.dot_general(
            xv_ref[...], uoT, (((1,), (0,)), ((), ())),
            preferred_element_type=jnp.float32)
        out_ref[...] = ((scale - 1.0) * acc_ref[...]
                        + scale * osora).astype(out_ref.dtype)


# ----------------------------------------------------------------------------
# Wrapper
# ----------------------------------------------------------------------------
def _round_up(x, m):
    return ((x + m - 1) // m) * m


def _pick_tile(dim, desired, quantum):
    """Largest multiple of `quantum` <= desired that divides dim; else full dim."""
    if dim <= desired:
        return dim
    t = (desired // quantum) * quantum
    while t >= quantum:
        if dim % t == 0:
            return t
        t -= quantum
    return dim  # full dim is always a legal block shape


def dora_linear_forward(x, W, U, V, S, O, magnitude,
                        *, tb=256, to=512, tk=1024, compute_dtype=None):
    """x:(B,IN) W:(OUT,IN) U:(OUT,R) V:(R,IN) S:(R,) O:(OUT,) magnitude:(OUT,)"""
    f32 = jnp.float32
    hi = jax.lax.Precision.HIGHEST
    B, IN = x.shape
    OUT, R = U.shape
    cdt = compute_dtype or x.dtype

    # NOTE: in a real layer, cast W (and the folded factors below) to the
    # compute dtype ONCE outside the hot path; these are no-ops when the
    # parameters already arrive in `cdt` (as in the demo).
    Wc = W if W.dtype == cdt else W.astype(cdt)
    xc = x if x.dtype == cdt else x.astype(cdt)

    # Fold the diagonal scalings into the low-rank factors once (tiny arrays).
    Uo = (O[:, None].astype(f32) * U.astype(f32)).astype(cdt)        # (OUT, R)
    Vs = (S[:, None].astype(f32) * V.astype(f32)).astype(cdt)        # (R, IN)
    Uo_f = Uo.astype(f32)
    Vs_f = Vs.astype(f32)

    # x/W-independent pieces of the norm expansion (tiny, lane-dense rows):
    #   quad[o] = Uo[o,:] @ (Vs Vs^T) @ Uo[o,:]^T
    gram = jnp.dot(Vs_f, Vs_f.T, precision=hi)                       # (R, R)
    quad_row = jnp.sum(jnp.dot(Uo_f, gram, precision=hi) * Uo_f,
                       axis=1).reshape(1, OUT)                       # (1, OUT)
    uoT = Uo_f.T                                                     # (R, OUT)
    mag_row = magnitude.reshape(1, OUT).astype(f32)                  # (1, OUT)

    # Tile selection (lane dims multiples of 128; batch quantum per dtype pack).
    sub = {4: 8, 2: 16, 1: 32}[jnp.dtype(cdt).itemsize]
    TO = _pick_tile(OUT, to, 128)
    TK = _pick_tile(IN, tk, 128)
    B_pad = _round_up(B, sub)
    TB = _pick_tile(B_pad, max(tb, sub), sub)
    if B_pad != B:
        xc = jnp.pad(xc, ((0, B_pad - B), (0, 0)))
    # v7x megacore balance: keep >= 2 parallel (b, j) work items if possible.
    while (B_pad // TB) * (OUT // TO) < 2 and TO % 256 == 0:
        TO //= 2

    # Low-rank projection hoisted out of the (j, k) loops: xv = x @ Vs^T (B,R).
    xv = jnp.dot(xc, Vs.T, preferred_element_type=f32)               # tiny GEMM

    # VMEM budget for the chosen tiles (double-buffered operands, f32 scratch,
    # plus the in-kernel (TO,TK) f32 W^2 temporary) with 2x headroom, capped to
    # stay inside v7x's 64 MiB physical VMEM.
    csz = jnp.dtype(cdt).itemsize
    osz = jnp.dtype(x.dtype).itemsize
    est = (2 * (TB * TK + TO * TK + R * TK) * csz
           + 2 * (TB * R + R * TO + 2 * TO) * 4
           + 2 * TB * TO * osz
           + (TB * TO + R * TO + 8 * TO) * 4
           + TO * TK * 4)
    vmem_limit = int(min(56 * 2 ** 20, max(32 * 2 ** 20, 2 * est)))

    out = pl.pallas_call(
        _dora_fused_kernel,
        out_shape=jax.ShapeDtypeStruct((B_pad, OUT), x.dtype),
        grid_spec=pltpu.PrefetchScalarGridSpec(
            num_scalar_prefetch=0,
            grid=(B_pad // TB, OUT // TO, IN // TK),
            in_specs=[
                pl.BlockSpec((TB, TK), lambda b, j, k: (b, k)),      # x
                pl.BlockSpec((TO, TK), lambda b, j, k: (j, k)),      # W
                pl.BlockSpec((R, TK), lambda b, j, k: (0, k)),       # diag(S) V
                pl.BlockSpec((TB, R), lambda b, j, k: (b, 0)),       # xv = x@Vs^T
                pl.BlockSpec((R, TO), lambda b, j, k: (0, j)),       # (diag(O) U)^T
                pl.BlockSpec((1, TO), lambda b, j, k: (0, j)),       # magnitude row
                pl.BlockSpec((1, TO), lambda b, j, k: (0, j)),       # quad-term row
            ],
            out_specs=pl.BlockSpec((TB, TO), lambda b, j, k: (b, j)),
            scratch_shapes=[pltpu.VMEM((TB, TO), f32),  # base-GEMM accumulator
                            pltpu.VMEM((R, TO), f32),   # G = Vs @ W^T accumulator
                            pltpu.VMEM((8, TO), f32)],  # ||W||^2 row accumulator
        ),
        compiler_params=pltpu.CompilerParams(
            dimension_semantics=("parallel", "parallel", "arbitrary"),
            vmem_limit_bytes=vmem_limit),
    )(xc, Wc, Vs, xv, uoT, mag_row, quad_row)

    return out[:B]


# ----------------------------------------------------------------------------
# Demo / correctness check
# ----------------------------------------------------------------------------
if __name__ == "__main__":
    key = jax.random.PRNGKey(0)
    B, IN, OUT, R = 32, 256, 256, 8
    kx, kw, ku, kv, ks, ko, km = jax.random.split(key, 7)

    dtype = jnp.bfloat16  # MXU operand dtype; accumulation/epilogue stay f32
    f32 = jnp.float32
    hi = jax.lax.Precision.HIGHEST

    x = jax.random.normal(kx, (B, IN), f32).astype(dtype)
    W = (0.1 * jax.random.normal(kw, (OUT, IN), f32)).astype(dtype)  # base weight
    U = (0.1 * jax.random.normal(ku, (OUT, R), f32)).astype(dtype)   # osora_U
    V = (0.1 * jax.random.normal(kv, (R, IN), f32)).astype(dtype)    # osora_V
    S = jax.random.normal(ks, (R,), f32)                             # osora_S
    O = jax.random.normal(ko, (OUT,), f32)                           # osora_O

    # Pure-JAX f32 reference mirroring the PyTorch forward (on the same
    # bf16-quantized parameters the kernel consumes).
    Uo_q = (O[:, None] * U.astype(f32)).astype(dtype).astype(f32)
    Vs_q = (S[:, None] * V.astype(f32)).astype(dtype).astype(f32)
    Wf, xf = W.astype(f32), x.astype(f32)
    dW = jnp.dot(Uo_q, Vs_q, precision=hi)
    weight_norm = jnp.sqrt(jnp.sum((Wf + dW) ** 2, axis=1))
    # magnitude: init as in update_layer(), perturbed so scale != 1 everywhere
    magnitude = weight_norm * (1.0 + 0.1 * jax.random.normal(km, (OUT,), f32))

    # Small tiles to exercise the full (b, j, k) = (2, 2, 2) grid.
    out = jax.block_until_ready(
        dora_linear_forward(x, W, U, V, S, O, magnitude, tb=16, to=128, tk=128))

    base = jnp.dot(xf, Wf.T, precision=hi)
    osora = jnp.dot(jnp.dot(xf, Vs_q.T, precision=hi), Uo_q.T, precision=hi)
    scale = (magnitude / weight_norm)[None, :]
    ref = (scale - 1.0) * base + scale * osora

    out_f32 = out.astype(f32)
    err = float(jnp.max(jnp.abs(out_f32 - ref)))
    assert jnp.allclose(out_f32, ref, atol=2e-2, rtol=2e-2), f"max abs err {err}"

    print("KERNEL_OK")
</pallas_src>

<mosaic_0001>
module attributes {stable_mosaic.version = 11 : i64} {
  func.func @_dora_fused_kernel(%arg0: i32, %arg1: i32, %arg2: i32, %arg3: memref<16x128xbf16, #tpu.memory_space<vmem>>, %arg4: memref<128x128xbf16, #tpu.memory_space<vmem>>, %arg5: memref<8x128xbf16, #tpu.memory_space<vmem>>, %arg6: memref<16x8xf32, #tpu.memory_space<vmem>>, %arg7: memref<8x128xf32, #tpu.memory_space<vmem>>, %arg8: memref<1x128xf32, #tpu.memory_space<vmem>>, %arg9: memref<1x128xf32, #tpu.memory_space<vmem>>, %arg10: memref<16x128xbf16, #tpu.memory_space<vmem>>, %arg11: memref<16x128xf32, #tpu.memory_space<vmem>>, %arg12: memref<8x128xf32, #tpu.memory_space<vmem>>, %arg13: memref<8x128xf32, #tpu.memory_space<vmem>>) attributes {dimension_semantics = [#tpu.dimension_semantics<parallel>, #tpu.dimension_semantics<parallel>, #tpu.dimension_semantics<arbitrary>], iteration_bounds = array<i64: 2, 2, 2>, scalar_prefetch = 0 : i64, scratch_operands = 3 : i64, tpu.core_type = #tpu.core_type<tc>, window_params = [{transform_indices = @transform_0, window_bounds = array<i64: 16, 128>}, {transform_indices = @transform_1, window_bounds = array<i64: 128, 128>}, {transform_indices = @transform_2, window_bounds = array<i64: 8, 128>}, {transform_indices = @transform_3, window_bounds = array<i64: 16, 8>}, {transform_indices = @transform_4, window_bounds = array<i64: 8, 128>}, {transform_indices = @transform_5, window_bounds = array<i64: 1, 128>}, {transform_indices = @transform_6, window_bounds = array<i64: 1, 128>}, {transform_indices = @transform_7, window_bounds = array<i64: 16, 128>}]} {
    %c0_i32 = arith.constant 0 : i32
    %0 = arith.cmpi eq, %arg2, %c0_i32 : i32
    %1 = arith.extui %0 : i1 to i32
    %c0_i32_0 = arith.constant 0 : i32
    %2 = arith.cmpi ne, %1, %c0_i32_0 : i32
    scf.if %2 {
      %cst_22 = arith.constant 0.000000e+00 : f32
      %24 = vector.broadcast %cst_22 : f32 to vector<16x128xf32>
      %c0_23 = arith.constant 0 : index
      %c0_24 = arith.constant 0 : index
      %25 = vector.load %arg11[%c0_23, %c0_24] : memref<16x128xf32, #tpu.memory_space<vmem>>, vector<16x128xf32>
      tpu.vector_store %arg11[%c0_23, %c0_24], %24 {strides = array<i32>} : memref<16x128xf32, #tpu.memory_space<vmem>>, vector<16x128xf32>,
      %cst_25 = arith.constant 0.000000e+00 : f32
      %26 = vector.broadcast %cst_25 : f32 to vector<8x128xf32>
      %c0_26 = arith.constant 0 : index
      %c0_27 = arith.constant 0 : index
      %27 = vector.load %arg12[%c0_26, %c0_27] : memref<8x128xf32, #tpu.memory_space<vmem>>, vector<8x128xf32>
      tpu.vector_store %arg12[%c0_26, %c0_27], %26 {strides = array<i32>} : memref<8x128xf32, #tpu.memory_space<vmem>>, vector<8x128xf32>,
      %cst_28 = arith.constant 0.000000e+00 : f32
      %28 = vector.broadcast %cst_28 : f32 to vector<8x128xf32>
      %c0_29 = arith.constant 0 : index
      %c0_30 = arith.constant 0 : index
      %29 = vector.load %arg13[%c0_29, %c0_30] : memref<8x128xf32, #tpu.memory_space<vmem>>, vector<8x128xf32>
      tpu.vector_store %arg13[%c0_29, %c0_30], %28 {strides = array<i32>} : memref<8x128xf32, #tpu.memory_space<vmem>>, vector<8x128xf32>,
    } else {
    }
    %c0 = arith.constant 0 : index
    %c0_1 = arith.constant 0 : index
    %3 = vector.load %arg4[%c0, %c0_1] : memref<128x128xbf16, #tpu.memory_space<vmem>>, vector<128x128xbf16>
    %c0_2 = arith.constant 0 : index
    %c0_3 = arith.constant 0 : index
    %4 = vector.load %arg11[%c0_2, %c0_3] : memref<16x128xf32, #tpu.memory_space<vmem>>, vector<16x128xf32>
    %c0_4 = arith.constant 0 : index
    %c0_5 = arith.constant 0 : index
    %5 = vector.load %arg3[%c0_4, %c0_5] : memref<16x128xbf16, #tpu.memory_space<vmem>>, vector<16x128xbf16>
    %cst = arith.constant dense<0.000000e+00> : vector<16x128xf32>
    %6 = tpu.matmul %5, %3, %cst {dimension_numbers = #tpu.dot_dimension_numbers<[1], [1], [0], [0], [0, 0, 1, 0], [], []>} : vector<16x128xbf16>, vector<128x128xbf16>, vector<16x128xf32> -> vector<16x128xf32>
    %7 = arith.addf %4, %6 : vector<16x128xf32>
    %c0_6 = arith.constant 0 : index
    %c0_7 = arith.constant 0 : index
    %8 = vector.load %arg11[%c0_6, %c0_7] : memref<16x128xf32, #tpu.memory_space<vmem>>, vector<16x128xf32>
    tpu.vector_store %arg11[%c0_6, %c0_7], %7 {strides = array<i32>} : memref<16x128xf32, #tpu.memory_space<vmem>>, vector<16x128xf32>,
    %c0_8 = arith.constant 0 : index
    %c0_9 = arith.constant 0 : index
    %9 = vector.load %arg12[%c0_8, %c0_9] : memref<8x128xf32, #tpu.memory_space<vmem>>, vector<8x128xf32>
    %c0_10 = arith.constant 0 : index
    %c0_11 = arith.constant 0 : index
    %10 = vector.load %arg5[%c0_10, %c0_11] : memref<8x128xbf16, #tpu.memory_space<vmem>>, vector<8x128xbf16>
    %cst_12 = arith.constant dense<0.000000e+00> : vector<8x128xf32>
    %11 = tpu.matmul %10, %3, %cst_12 {dimension_numbers = #tpu.dot_dimension_numbers<[1], [1], [0], [0], [0, 0, 1, 0], [], []>} : vector<8x128xbf16>, vector<128x128xbf16>, vector<8x128xf32> -> vector<8x128xf32>
    %12 = arith.addf %9, %11 : vector<8x128xf32>
    %c0_13 = arith.constant 0 : index
    %c0_14 = arith.constant 0 : index
    %13 = vector.load %arg12[%c0_13, %c0_14] : memref<8x128xf32, #tpu.memory_space<vmem>>, vector<8x128xf32>
    tpu.vector_store %arg12[%c0_13, %c0_14], %12 {strides = array<i32>} : memref<8x128xf32, #tpu.memory_space<vmem>>, vector<8x128xf32>,
    %14 = arith.extf %3 : vector<128x128xbf16> to vector<128x128xf32>
    %cst_15 = arith.constant 1.000000e+00 : f32
    %15 = vector.broadcast %cst_15 : f32 to vector<8x128xf32>
    %c0_16 = arith.constant 0 : index
    %c0_17 = arith.constant 0 : index
    %16 = vector.load %arg13[%c0_16, %c0_17] : memref<8x128xf32, #tpu.memory_space<vmem>>, vector<8x128xf32>
    %17 = arith.mulf %14, %14 : vector<128x128xf32>
    %cst_18 = arith.constant dense<0.000000e+00> : vector<8x128xf32>
    %18 = tpu.matmul %15, %17, %cst_18 {dimension_numbers = #tpu.dot_dimension_numbers<[1], [1], [0], [0], [0, 0, 1, 0], [], []>} : vector<8x128xf32>, vector<128x128xf32>, vector<8x128xf32> -> vector<8x128xf32>
    %19 = arith.addf %16, %18 : vector<8x128xf32>
    %c0_19 = arith.constant 0 : index
    %c0_20 = arith.constant 0 : index
    %20 = vector.load %arg13[%c0_19, %c0_20] : memref<8x128xf32, #tpu.memory_space<vmem>>, vector<8x128xf32>
    tpu.vector_store %arg13[%c0_19, %c0_20], %19 {strides = array<i32>} : memref<8x128xf32, #tpu.memory_space<vmem>>, vector<8x128xf32>,
    %c1_i32 = arith.constant 1 : i32
    %21 = arith.cmpi eq, %arg2, %c1_i32 : i32
    %22 = arith.extui %21 : i1 to i32
    %c0_i32_21 = arith.constant 0 : i32
    %23 = arith.cmpi ne, %22, %c0_i32_21 : i32
    scf.if %23 {
      %c0_22 = arith.constant 0 : index
      %c0_23 = arith.constant 0 : index
      %24 = vector.load %arg7[%c0_22, %c0_23] : memref<8x128xf32, #tpu.memory_space<vmem>>, vector<8x128xf32>
      %c0_24 = arith.constant 0 : index
      %c0_25 = arith.constant 0 : index
      %25 = vector.load %arg12[%c0_24, %c0_25] : memref<8x128xf32, #tpu.memory_space<vmem>>, vector<8x128xf32>
      %26 = arith.mulf %24, %25 : vector<8x128xf32>
      %cst_26 = arith.constant dense<0.000000e+00> : vector<128xf32>
      %27 = vector.multi_reduction <add>, %26, %cst_26 [0] : vector<8x128xf32> to vector<128xf32>
      %28 = vector.shape_cast %27 : vector<128xf32> to vector<1x128xf32>
      %c0_27 = arith.constant 0 : index
      %c0_28 = arith.constant 0 : index
      %29 = vector.load %arg13[%c0_27, %c0_28] : memref<8x128xf32, #tpu.memory_space<vmem>>, vector<1x128xf32>
      %cst_29 = arith.constant 2.000000e+00 : f32
      %30 = vector.broadcast %cst_29 : f32 to vector<1x128xf32>
      %31 = arith.mulf %30, %28 : vector<1x128xf32>
      %32 = arith.addf %29, %31 : vector<1x128xf32>
      %c0_30 = arith.constant 0 : index
      %c0_31 = arith.constant 0 : index
      %33 = vector.load %arg9[%c0_30, %c0_31] : memref<1x128xf32, #tpu.memory_space<vmem>>, vector<1x128xf32>
      %34 = arith.addf %32, %33 : vector<1x128xf32>
      %c0_32 = arith.constant 0 : index
      %c0_33 = arith.constant 0 : index
      %35 = vector.load %arg8[%c0_32, %c0_33] : memref<1x128xf32, #tpu.memory_space<vmem>>, vector<1x128xf32>
      %36 = math.rsqrt %34 : vector<1x128xf32>
      %37 = arith.mulf %35, %36 : vector<1x128xf32>
      %c0_34 = arith.constant 0 : index
      %c0_35 = arith.constant 0 : index
      %38 = vector.load %arg6[%c0_34, %c0_35] : memref<16x8xf32, #tpu.memory_space<vmem>>, vector<16x8xf32>
      %cst_36 = arith.constant dense<0.000000e+00> : vector<16x128xf32>
      %39 = tpu.matmul %38, %24, %cst_36 {dimension_numbers = #tpu.dot_dimension_numbers<[1], [0], [0], [1], [0, 0, 1, 1], [], []>} : vector<16x8xf32>, vector<8x128xf32>, vector<16x128xf32> -> vector<16x128xf32>
      %cst_37 = arith.constant 1.000000e+00 : f32
      %40 = vector.broadcast %cst_37 : f32 to vector<1x128xf32>
      %41 = arith.subf %37, %40 : vector<1x128xf32>
      %c0_38 = arith.constant 0 : index
      %c0_39 = arith.constant 0 : index
      %42 = vector.load %arg11[%c0_38, %c0_39] : memref<16x128xf32, #tpu.memory_space<vmem>>, vector<16x128xf32>
      %43 = vector.broadcast %41 : vector<1x128xf32> to vector<16x128xf32>
      %44 = arith.mulf %43, %42 : vector<16x128xf32>
      %45 = vector.broadcast %37 : vector<1x128xf32> to vector<16x128xf32>
      %46 = arith.mulf %45, %39 : vector<16x128xf32>
      %47 = arith.addf %44, %46 : vector<16x128xf32>
      %48 = arith.truncf %47 : vector<16x128xf32> to vector<16x128xbf16>
      %c0_40 = arith.constant 0 : index
      %c0_41 = arith.constant 0 : index
      %49 = vector.load %arg10[%c0_40, %c0_41] : memref<16x128xbf16, #tpu.memory_space<vmem>>, vector<16x128xbf16>
      tpu.vector_store %arg10[%c0_40, %c0_41], %48 {strides = array<i32>} : memref<16x128xbf16, #tpu.memory_space<vmem>>, vector<16x128xbf16>,
    } else {
    }
    return
  }
  func.func @transform_0(%arg0: i32, %arg1: i32, %arg2: i32) -> (i32, i32) {
    %c0_i32 = arith.constant 0 : i32
    return %arg0, %arg2 : i32, i32
  }
  func.func @transform_1(%arg0: i32, %arg1: i32, %arg2: i32) -> (i32, i32) {
    %c0_i32 = arith.constant 0 : i32
    return %arg1, %arg2 : i32, i32
  }
  func.func @transform_2(%arg0: i32, %arg1: i32, %arg2: i32) -> (i32, i32) {
    %c0_i32 = arith.constant 0 : i32
    %c0_i32_0 = arith.constant 0 : i32
    return %c0_i32, %arg2 : i32, i32
  }
  func.func @transform_3(%arg0: i32, %arg1: i32, %arg2: i32) -> (i32, i32) {
    %c0_i32 = arith.constant 0 : i32
    %c0_i32_0 = arith.constant 0 : i32
    return %arg0, %c0_i32 : i32, i32
  }
  func.func @transform_4(%arg0: i32, %arg1: i32, %arg2: i32) -> (i32, i32) {
    %c0_i32 = arith.constant 0 : i32
    %c0_i32_0 = arith.constant 0 : i32
    return %c0_i32, %arg1 : i32, i32
  }
  func.func @transform_5(%arg0: i32, %arg1: i32, %arg2: i32) -> (i32, i32) {
    %c0_i32 = arith.constant 0 : i32
    %c0_i32_0 = arith.constant 0 : i32
    return %c0_i32, %arg1 : i32, i32
  }
  func.func @transform_6(%arg0: i32, %arg1: i32, %arg2: i32) -> (i32, i32) {
    %c0_i32 = arith.constant 0 : i32
    %c0_i32_0 = arith.constant 0 : i32
    return %c0_i32, %arg1 : i32, i32
  }
  func.func @transform_7(%arg0: i32, %arg1: i32, %arg2: i32) -> (i32, i32) {
    %c0_i32 = arith.constant 0 : i32
    return %arg0, %arg1 : i32, i32
  }
}

</mosaic_0001>

<llo_original>
// kernel: tpu_custom_call.1
$region0: #{tpu_custom_call.1}
  #allocation0 [shape = 'u32[]', space=smem, size = 0x4, offset = 0x4, fixed_abs, tag = 'smem constant byte address 0x4 - core index']
  #allocation1 [shape = 'u32[72,128]{1,0:T(1,128)}', space=vmem, size = 0x9000, scoped, tag = 'internal scratch']
  #allocation2 [shape = 'f32[16,128]{1,0:T(8,128)}', space=vmem, size = 0x2000, scoped, tag = 'scratch operand']
  #allocation3 [shape = 'f32[8,128]{1,0:T(8,128)}', space=vmem, size = 0x1000, scoped, tag = 'scratch operand']
  #allocation4 [shape = 'f32[8,128]{1,0:T(8,128)}', space=vmem, size = 0x1000, scoped, tag = 'scratch operand']
  %s0 = inlined_call_operand.vmem [shape: bf16[32,256], index: 0, kind: input, shape index: {}]
  %s1 = inlined_call_operand.hbm [shape: bf16[256,256], index: 1, kind: input, shape index: {}]
  %s2 = inlined_call_operand.vmem [shape: bf16[8,256], index: 2, kind: input, shape index: {}]
  %s3 = inlined_call_operand.vmem [shape: f32[32,8], index: 3, kind: input, shape index: {}]
  %s4 = inlined_call_operand.hbm [shape: f32[8,256], index: 4, kind: input, shape index: {}]
  %s5 = inlined_call_operand.vmem [shape: f32[1,256], index: 5, kind: input, shape index: {}]
  %s6 = inlined_call_operand.vmem [shape: f32[1,256], index: 6, kind: input, shape index: {}]
  %s7 = inlined_call_operand.hbm [shape: bf16[32,256], index: 7, kind: output, shape index: {}]
  %s8 = sld [smem:[#allocation0]]
  $region118: #{tpu_custom_call.1} parent=0
    _
  %s10 = ssub.s32 1, %s8
  %s11 = scalar_select 0, %s10, %s8
  $region1: #{tpu_custom_call.1} parent=0
    #allocation5 [shape = 'u8[8192]{0}', space=vmem, size = 0x2000, scoped, tag = 'input window, operand 0']
    #allocation6 [shape = 'u8[65536]{0}', space=vmem, size = 0x10000, scoped, tag = 'input window, operand 1']
    #allocation7 [shape = 's32[2]{0}', space=sflag, size = 0x8, scoped, tag = 'scoped memory for tpu_custom_call.1']
    #allocation8 [shape = 's32[2]{0}', space=sflag, size = 0x8, scoped, tag = 'scoped memory for tpu_custom_call.1']
    #allocation9 [shape = 'u8[8192]{0}', space=vmem, size = 0x2000, scoped, tag = 'input window, operand 4']
    #allocation10 [shape = 's32[2]{0}', space=sflag, size = 0x8, scoped, tag = 'scoped memory for tpu_custom_call.1']
    #allocation11 [shape = 'u8[8192]{0}', space=vmem, size = 0x2000, scoped, tag = 'output window, operand 0']
    %12 = vsyncpa [#allocation7], 0
    %s13 = scalar_lea.sflag [#allocation7], 1
    %14 = vsyncpa %s13, 0
    %15 = vsyncpa [#allocation10], 0
    %s16 = scalar_lea.sflag [#allocation10], 1
    %17 = vsyncpa %s16, 0
    %18 = vsyncpa [#allocation8], 0
    %s19 = scalar_lea.sflag [#allocation8], 1
    %20 = vsyncpa %s19, 0
    loop: start=0, step=1, limit=10
    $region2: #{tpu_custom_call.1} parent=1 // loop_pre_header
      _
    $region3: #{tpu_custom_call.1} parent=1 // loop_header
      %s22 = sphi 0, %s26
      %p23 = scmp.ge.s32.totalorder %s22, 10
      %s29 = sphi 0, %s48
      %s30 = sphi 0, %s44
      %s31 = sphi 0, %s40
      %s32 = sphi 0, %s29
      %s33 = sphi 0, %s30
      %s34 = sphi 0, %s31
      %s35 = sphi 0, %s32
      %s36 = sphi 0, %s33
      %s37 = sphi 0, %s34
      %s53 = sphi 0, %s55
      %s56 = sphi 0, %s53
      %s57 = sphi 0, %s56
      %s73 = sphi 0, %s57
      %s81 = sphi 0, %s83
      %s84 = sphi 0, %s81
      %s85 = sphi 0, %s84
      %s101 = sphi 0, %s85
      %s107 = sphi 0, %s109
      %s110 = sphi 0, %s107
      %s111 = sphi 0, %s110
      %s127 = sphi 0, %s111
      %s133 = sphi 0, %s135
      %s136 = sphi 0, %s133
      %s137 = sphi 0, %s136
      %s153 = sphi 0, %s137
      %s159 = sphi 0, %s161
      %s162 = sphi 0, %s159
      %s163 = sphi 0, %s162
      %s179 = sphi 0, %s163
      %s185 = sphi 0, %s187
      %s188 = sphi 0, %s185
      %s189 = sphi 0, %s188
      %s205 = sphi 0, %s189
      %s211 = sphi 0, %s213
      %s214 = sphi 0, %s211
      %s215 = sphi 0, %s214
      %s231 = sphi 0, %s215
      %s239 = sphi 0, %s241
      %s242 = sphi 0, %s239
      %s243 = sphi 0, %s242
      %s259 = sphi 0, %s243
    $region4: #{tpu_custom_call.1} parent=1 // loop_header_branch
      %25 = sbr.rel (%p23) target = $region8
    $region5: #{tpu_custom_call.1} parent=1 // loop_body
      %s27 = ssub.s32 %s22, 1
      %s28 = ssub.s32 %s22, 2
      %s38 = sadd.s32 1, %s31
      %p39 = scmp.ge.s32.totalorder %s38, 2
      %s40 = scalar_select %p39, 0, %s38
      %s41 = sadd.s32 1, %s30
      %s42 = scalar_select %p39, %s41, %s30
      %p43 = scmp.ge.s32.totalorder %s42, 2
      %s44 = scalar_select %p43, 0, %s42
      %s45 = sadd.s32 1, %s29
      %s46 = scalar_select %p43, %s45, %s29
      %p47 = scmp.ge.s32.totalorder %s46, 2
      %s48 = scalar_select %p47, 0, %s46
      %s49 = ssub.s32 %s29, %s48
      %s50 = ssub.s32 %s31, %s40
      %s51 = sor.u32 %s49, %s50
      %p52 = scmp.eq.s32.totalorder %s51, 0
      %s54 = sadd.s32 %s53, 1
      %s55 = scalar_select %p52, %s53, %s54
      %p58 = pneg %p52
      %p59 = scmp.eq.s32.totalorder %s22, 7
      %p60 = por %p58, %p59
      %p61 = scmp.ne.s32.totalorder %s53, %s56
      %p62 = scmp.eq.s32.totalorder %s22, 0
      %p63 = por %p61, %p62
      %p64 = scmp.ne.s32.totalorder %s53, %s56
      %p65 = scmp.eq.s32.totalorder %s27, 7
      %p66 = por %p64, %p65
      %p67 = scmp.ne.s32.totalorder %s56, %s57
      %p68 = scmp.eq.s32.totalorder %s27, 0
      %p69 = por %p67, %p68
      %p70 = scmp.ne.s32.totalorder %s56, %s57
      %p71 = scmp.eq.s32.totalorder %s28, 7
      %p72 = por %p70, %p71
      %p74 = scmp.ne.s32.totalorder %s57, %s73
      %p75 = scmp.eq.s32.totalorder %s28, 0
      %p76 = por %p74, %p75
      %s77 = ssub.s32 %s30, %s44
      %s78 = ssub.s32 %s31, %s40
      %s79 = sor.u32 %s77, %s78
      %p80 = scmp.eq.s32.totalorder %s79, 0
      %s82 = sadd.s32 %s81, 1
      %s83 = scalar_select %p80, %s81, %s82
      %p86 = pneg %p80
      %p87 = scmp.eq.s32.totalorder %s22, 7
      %p88 = por %p86, %p87
      %p89 = scmp.ne.s32.totalorder %s81, %s84
      %p90 = scmp.eq.s32.totalorder %s22, 0
      %p91 = por %p89, %p90
      %p92 = scmp.ne.s32.totalorder %s81, %s84
      %p93 = scmp.eq.s32.totalorder %s27, 7
      %p94 = por %p92, %p93
      %p95 = scmp.ne.s32.totalorder %s84, %s85
      %p96 = scmp.eq.s32.totalorder %s27, 0
      %p97 = por %p95, %p96
      %p98 = scmp.ne.s32.totalorder %s84, %s85
      %p99 = scmp.eq.s32.totalorder %s28, 7
      %p100 = por %p98, %p99
      %p102 = scmp.ne.s32.totalorder %s85, %s101
      %p103 = scmp.eq.s32.totalorder %s28, 0
      %p104 = por %p102, %p103
      %s105 = ssub.s32 %s31, %s40
      %p106 = scmp.eq.s32.totalorder %s105, 0
      %s108 = sadd.s32 %s107, 1
      %s109 = scalar_select %p106, %s107, %s108
      %p112 = pneg %p106
      %p113 = scmp.eq.s32.totalorder %s22, 7
      %p114 = por %p112, %p113
      %p115 = scmp.ne.s32.totalorder %s107, %s110
      %p116 = scmp.eq.s32.totalorder %s22, 0
      %p117 = por %p115, %p116
      %p118 = scmp.ne.s32.totalorder %s107, %s110
      %p119 = scmp.eq.s32.totalorder %s27, 7
      %p120 = por %p118, %p119
      %p121 = scmp.ne.s32.totalorder %s110, %s111
      %p122 = scmp.eq.s32.totalorder %s27, 0
      %p123 = por %p121, %p122
      %p124 = scmp.ne.s32.totalorder %s110, %s111
      %p125 = scmp.eq.s32.totalorder %s28, 7
      %p126 = por %p124, %p125
      %p128 = scmp.ne.s32.totalorder %s111, %s127
      %p129 = scmp.eq.s32.totalorder %s28, 0
      %p130 = por %p128, %p129
      %s131 = ssub.s32 %s29, %s48
      %p132 = scmp.eq.s32.totalorder %s131, 0
      %s134 = sadd.s32 %s133, 1
      %s135 = scalar_select %p132, %s133, %s134
      %p138 = pneg %p132
      %p139 = scmp.eq.s32.totalorder %s22, 7
      %p140 = por %p138, %p139
      %p141 = scmp.ne.s32.totalorder %s133, %s136
      %p142 = scmp.eq.s32.totalorder %s22, 0
      %p143 = por %p141, %p142
      %p144 = scmp.ne.s32.totalorder %s133, %s136
      %p145 = scmp.eq.s32.totalorder %s27, 7
      %p146 = por %p144, %p145
      %p147 = scmp.ne.s32.totalorder %s136, %s137
      %p148 = scmp.eq.s32.totalorder %s27, 0
      %p149 = por %p147, %p148
      %p150 = scmp.ne.s32.totalorder %s136, %s137
      %p151 = scmp.eq.s32.totalorder %s28, 7
      %p152 = por %p150, %p151
      %p154 = scmp.ne.s32.totalorder %s137, %s153
      %p155 = scmp.eq.s32.totalorder %s28, 0
      %p156 = por %p154, %p155
      %s157 = ssub.s32 %s30, %s44
      %p158 = scmp.eq.s32.totalorder %s157, 0
      %s160 = sadd.s32 %s159, 1
      %s161 = scalar_select %p158, %s159, %s160
      %p164 = pneg %p158
      %p165 = scmp.eq.s32.totalorder %s22, 7
      %p166 = por %p164, %p165
      %p167 = scmp.ne.s32.totalorder %s159, %s162
      %p168 = scmp.eq.s32.totalorder %s22, 0
      %p169 = por %p167, %p168
      %p170 = scmp.ne.s32.totalorder %s159, %s162
      %p171 = scmp.eq.s32.totalorder %s27, 7
      %p172 = por %p170, %p171
      %p173 = scmp.ne.s32.totalorder %s162, %s163
      %p174 = scmp.eq.s32.totalorder %s27, 0
      %p175 = por %p173, %p174
      %p176 = scmp.ne.s32.totalorder %s162, %s163
      %p177 = scmp.eq.s32.totalorder %s28, 7
      %p178 = por %p176, %p177
      %p180 = scmp.ne.s32.totalorder %s163, %s179
      %p181 = scmp.eq.s32.totalorder %s28, 0
      %p182 = por %p180, %p181
      %s183 = ssub.s32 %s30, %s44
      %p184 = scmp.eq.s32.totalorder %s183, 0
      %s186 = sadd.s32 %s185, 1
      %s187 = scalar_select %p184, %s185, %s186
      %p190 = pneg %p184
      %p191 = scmp.eq.s32.totalorder %s22, 7
      %p192 = por %p190, %p191
      %p193 = scmp.ne.s32.totalorder %s185, %s188
      %p194 = scmp.eq.s32.totalorder %s22, 0
      %p195 = por %p193, %p194
      %p196 = scmp.ne.s32.totalorder %s185, %s188
      %p197 = scmp.eq.s32.totalorder %s27, 7
      %p198 = por %p196, %p197
      %p199 = scmp.ne.s32.totalorder %s188, %s189
      %p200 = scmp.eq.s32.totalorder %s27, 0
      %p201 = por %p199, %p200
      %p202 = scmp.ne.s32.totalorder %s188, %s189
      %p203 = scmp.eq.s32.totalorder %s28, 7
      %p204 = por %p202, %p203
      %p206 = scmp.ne.s32.totalorder %s189, %s205
      %p207 = scmp.eq.s32.totalorder %s28, 0
      %p208 = por %p206, %p207
      %s209 = ssub.s32 %s30, %s44
      %p210 = scmp.eq.s32.totalorder %s209, 0
      %s212 = sadd.s32 %s211, 1
      %s213 = scalar_select %p210, %s211, %s212
      %p216 = pneg %p210
      %p217 = scmp.eq.s32.totalorder %s22, 7
      %p218 = por %p216, %p217
      %p219 = scmp.ne.s32.totalorder %s211, %s214
      %p220 = scmp.eq.s32.totalorder %s22, 0
      %p221 = por %p219, %p220
      %p222 = scmp.ne.s32.totalorder %s211, %s214
      %p223 = scmp.eq.s32.totalorder %s27, 7
      %p224 = por %p222, %p223
      %p225 = scmp.ne.s32.totalorder %s214, %s215
      %p226 = scmp.eq.s32.totalorder %s27, 0
      %p227 = por %p225, %p226
      %p228 = scmp.ne.s32.totalorder %s214, %s215
      %p229 = scmp.eq.s32.totalorder %s28, 7
      %p230 = por %p228, %p229
      %p232 = scmp.ne.s32.totalorder %s215, %s231
      %p233 = scmp.eq.s32.totalorder %s28, 0
      %p234 = por %p232, %p233
      %s235 = ssub.s32 %s29, %s48
      %s236 = ssub.s32 %s30, %s44
      %s237 = sor.u32 %s235, %s236
      %p238 = scmp.eq.s32.totalorder %s237, 0
      %s240 = sadd.s32 %s239, 1
      %s241 = scalar_select %p238, %s239, %s240
      %p244 = pneg %p238
      %p245 = scmp.eq.s32.totalorder %s22, 7
      %p246 = por %p244, %p245
      %p247 = scmp.ne.s32.totalorder %s239, %s242
      %p248 = scmp.eq.s32.totalorder %s22, 0
      %p249 = por %p247, %p248
      %p250 = scmp.ne.s32.totalorder %s239, %s242
      %p251 = scmp.eq.s32.totalorder %s27, 7
      %p252 = por %p250, %p251
      %p253 = scmp.ne.s32.totalorder %s242, %s243
      %p254 = scmp.eq.s32.totalorder %s27, 0
      %p255 = por %p253, %p254
      %p256 = scmp.ne.s32.totalorder %s242, %s243
      %p257 = scmp.eq.s32.totalorder %s28, 7
      %p258 = por %p256, %p257
      %p260 = scmp.ne.s32.totalorder %s243, %s259
      %p261 = scmp.eq.s32.totalorder %s28, 0
      %p262 = por %p260, %p261
      %p263 = scmp.le.s32.totalorder 1, %s22
      %p264 = scmp.lt.s32.totalorder %s22, 9
      %p265 = pnand %p263, %p264
      %p266 = pneg %p265
      // Predicated region
      $region9: #{tpu_custom_call.1} parent=5 // pred_check
        _
      $region10: #{tpu_custom_call.1} parent=5 // pred_check_branch
        %268 = sbr.rel (%p265) target = $region12
      $region11: #{tpu_custom_call.1} parent=5 // pred_region
        %s269 = ssub.s32 %s22, 1
      $region12: #{tpu_custom_call.1} parent=5 // pred_fallthru
        _
      %p270 = scmp.lt.s32.totalorder %s22, 8
      // Predicated region
      $region13: #{tpu_custom_call.1} parent=5 // pred_check
        %p271 = pneg %p270
      $region14: #{tpu_custom_call.1} parent=5 // pred_check_branch
        %273 = sbr.rel (%p271) target = $region16
      $region15: #{tpu_custom_call.1} parent=5 // pred_region
        // Predicated region
        $region17: #{tpu_custom_call.1} parent=15 // pred_check
          %p274 = pneg %p63
        $region18: #{tpu_custom_call.1} parent=15 // pred_check_branch
          %276 = sbr.rel (%p274) target = $region20
        $region19: #{tpu_custom_call.1} parent=15 // pred_region
          %s277 = sand.u32 %s53, 1
          %s278 = sand.u32 %s53, 1
          %s279 = smul.addr %s278, 8
          %s280 = scalar_lea.vmem [#allocation5], %s279
          %s281 = smul.u32 2, %s29
          %s282 = smul.addr %s281, 2
          %s283 = sadd.s32 %s31, %s282
          %s284 = smul.addr %s283, 4
          %s285 = scalar_lea.vmem %s0, %s284
          // Predicated region
          $region21: #{tpu_custom_call.1} parent=19 // pred_check
            _
          $region22: #{tpu_custom_call.1} parent=19 // pred_check_branch
            %287 = sbr.rel (0) target = $region24
          $region23: #{tpu_custom_call.1} parent=19 // pred_region
            // Predicated region
            $region25: #{tpu_custom_call.1} parent=23 // pred_check
              _
            $region26: #{tpu_custom_call.1} parent=23 // pred_check_branch
              %289 = sbr.rel target = $region28
            $region27: #{tpu_custom_call.1} parent=23 // pred_region
              // Predicated region
              $region40: #{tpu_custom_call.1} parent=27 // pred_check
                _
              $region41: #{tpu_custom_call.1} parent=27 // pred_check_branch
                %307 = sbr.rel (0) target = $region43
              $region42: #{tpu_custom_call.1} parent=27 // pred_region
                loop: start=0, step=1, limit=1
                $region44: #{tpu_custom_call.1} parent=42 // loop_pre_header
                  _
                $region45: #{tpu_custom_call.1} parent=42 // loop_header
                  %s309 = sphi 0, %s313
                  %p310 = scmp.ge.s32.totalorder %s309, 1
                  %s314 = sphi %s285, %s285
                  %s315 = sphi %s280, %s280
                $region46: #{tpu_custom_call.1} parent=42 // loop_header_branch
                  %312 = sbr.rel (%p310) target = $region50
                $region47: #{tpu_custom_call.1} parent=42 // loop_body
                  _
                $region48: #{tpu_custom_call.1} parent=42 // loop_footer
                  %s313 = sadd.s32 1, %s309
                $region49: #{tpu_custom_call.1} parent=42 // loop_footer_branch
                  %308 = sbr.rel target = $region45
                $region50: #{tpu_custom_call.1} parent=42 // loop_exit
                  _
                %s317 = ssub.s32 16, 1
                loop: start=0, step=1, limit=1
                $region51: #{tpu_custom_call.1} parent=42 // loop_pre_header
                  _
                $region52: #{tpu_custom_call.1} parent=42 // loop_header
                  %s319 = sphi 0, %s323
                  %p320 = scmp.ge.s32.totalorder %s319, 1
                  %s324 = sphi %s285, %s285
                  %s325 = sphi %s280, %s280
                $region53: #{tpu_custom_call.1} parent=42 // loop_header_branch
                  %322 = sbr.rel (%p320) target = $region57
                $region54: #{tpu_custom_call.1} parent=42 // loop_body
                  %v326 = vld [vmem:[%s324] sm:%s317]
                  %327 = vst [vmem:[%s325] sm:%s317] %v326
                  %v328 = vld [vmem:[%s324 + $0x8] sm:%s317]
                  %329 = vst [vmem:[%s325 + $0x4] sm:%s317] %v328
                $region55: #{tpu_custom_call.1} parent=42 // loop_footer
                  %s323 = sadd.s32 1, %s319
                $region56: #{tpu_custom_call.1} parent=42 // loop_footer_branch
                  %318 = sbr.rel target = $region52
                $region57: #{tpu_custom_call.1} parent=42 // loop_exit
                  _
              $region43: #{tpu_custom_call.1} parent=27 // pred_fallthru
                _
            $region28: #{tpu_custom_call.1} parent=23 // pred_fallthru
              _
            // Predicated region
            $region29: #{tpu_custom_call.1} parent=23 // pred_check
              _
            $region30: #{tpu_custom_call.1} parent=23 // pred_check_branch
              %291 = sbr.rel (0) target = $region32
            $region31: #{tpu_custom_call.1} parent=23 // pred_region
              %s293 = ssub.s32 16, 1
              loop: start=0, step=1, limit=1
              $region33: #{tpu_custom_call.1} parent=31 // loop_pre_header
                _
              $region34: #{tpu_custom_call.1} parent=31 // loop_header
                %s295 = sphi 0, %s299
                %p296 = scmp.ge.s32.totalorder %s295, 1
                %s300 = sphi %s285, %s285
                %s301 = sphi %s280, %s280
              $region35: #{tpu_custom_call.1} parent=31 // loop_header_branch
                %298 = sbr.rel (%p296) target = $region39
              $region36: #{tpu_custom_call.1} parent=31 // loop_body
                %v302 = vld [vmem:[%s300] sm:%s293]
                %303 = vst [vmem:[%s301] sm:%s293] %v302
                %v304 = vld [vmem:[%s300 + $0x8] sm:%s293]
                %305 = vst [vmem:[%s301 + $0x4] sm:%s293] %v304
              $region37: #{tpu_custom_call.1} parent=31 // loop_footer
                %s299 = sadd.s32 1, %s295
              $region38: #{tpu_custom_call.1} parent=31 // loop_footer_branch
                %294 = sbr.rel target = $region34
              $region39: #{tpu_custom_call.1} parent=31 // loop_exit
                _
            $region32: #{tpu_custom_call.1} parent=23 // pred_fallthru
              _
          $region24: #{tpu_custom_call.1} parent=19 // pred_fallthru
            _
          %330 = vnop
        $region20: #{tpu_custom_call.1} parent=15 // pred_fallthru
          _
        // Predicated region
        $region58: #{tpu_custom_call.1} parent=15 // pred_check
          %p331 = pneg %p91
        $region59: #{tpu_custom_call.1} parent=15 // pred_check_branch
          %333 = sbr.rel (%p331) target = $region61
        $region60: #{tpu_custom_call.1} parent=15 // pred_region
          %s334 = sand.u32 %s81, 1
          %s335 = scalar_lea.sflag [#allocation7], %s334
          %s336 = sand.u32 %s81, 1
          %s337 = smul.addr %s336, 64
          %s338 = scalar_lea.vmem [#allocation6], %s337
          %s339 = smul.u32 16, %s30
          %341 = vsyncadd %s335, 0
          %s342 = smul.addr %s339, 2
          %s343 = sadd.s32 %s31, %s342
          %s344 = smul.addr %s343, 4
          %s345 = scalar_lea.hbm %s1, %s344
          %s346 = sshll.u32 %s345, 4
          %s347 = int_to_ptr.hbm [resolvable:$true] %s346
          %s348 = sshll.u32 %s338, 4
          %s349 = int_to_ptr.vmem [resolvable:$true] %s348
          %354 = dma.hbm_to_vmem [thread:$0]  %s347, 1024, %s349, %s335, 128, 64, 4
        $region61: #{tpu_custom_call.1} parent=15 // pred_fallthru
          _
        // Predicated region
        $region62: #{tpu_custom_call.1} parent=15 // pred_check
          %p355 = pneg %p117
        $region63: #{tpu_custom_call.1} parent=15 // pred_check_branch
          %357 = sbr.rel (%p355) target = $region65
        $region64: #{tpu_custom_call.1} parent=15 // pred_region
          %p358 = scmp.lt.s32.totalorder %s31, 1
          %s359 = scalar_select %p358, %s31, 1
          %s360 = smul.addr %s359, 4
          %s361 = scalar_lea.vmem %s2, %s360
        $region65: #{tpu_custom_call.1} parent=15 // pred_fallthru
          _
        // Predicated region
        $region66: #{tpu_custom_call.1} parent=15 // pred_check
          %p362 = pneg %p143
        $region67: #{tpu_custom_call.1} parent=15 // pred_check_branch
          %364 = sbr.rel (%p362) target = $region69
        $region68: #{tpu_custom_call.1} parent=15 // pred_region
          %s365 = smul.u32 2, %s29
          %p366 = scmp.lt.s32.totalorder %s365, 3
          %s367 = scalar_select %p366, %s365, 3
          %s368 = smul.addr %s367, 8
          %s369 = scalar_lea.vmem %s3, %s368
          %s370 = smul.u32 2, %s29
        $region69: #{tpu_custom_call.1} parent=15 // pred_fallthru
          _
        // Predicated region
        $region70: #{tpu_custom_call.1} parent=15 // pred_check
          %p371 = pneg %p169
        $region71: #{tpu_custom_call.1} parent=15 // pred_check_branch
          %373 = sbr.rel (%p371) target = $region73
        $region72: #{tpu_custom_call.1} parent=15 // pred_region
          %s374 = sand.u32 %s159, 1
          %s375 = scalar_lea.sflag [#allocation10], %s374
          %s376 = sand.u32 %s159, 1
          %s377 = smul.addr %s376, 8
          %s378 = scalar_lea.vmem [#allocation9], %s377
          %380 = vsyncadd %s375, 0
          %s381 = smul.addr %s30, 8
          %s382 = scalar_lea.hbm %s4, %s381
          %s384 = sshll.u32 %s382, 4
          %s385 = int_to_ptr.hbm [resolvable:$true] %s384
          %s386 = sshll.u32 %s378, 4
          %s387 = int_to_ptr.vmem [resolvable:$true] %s386
          %389 = dma.hbm_to_vmem [thread:$0]  %s385, 128, %s387, %s375
        $region73: #{tpu_custom_call.1} parent=15 // pred_fallthru
          _
        // Predicated region
        $region74: #{tpu_custom_call.1} parent=15 // pred_check
          %p390 = pneg %p195
        $region75: #{tpu_custom_call.1} parent=15 // pred_check_branch
          %392 = sbr.rel (%p390) target = $region77
        $region76: #{tpu_custom_call.1} parent=15 // pred_region
          %p393 = scmp.lt.s32.totalorder %s30, 1
          %s394 = scalar_select %p393, %s30, 1
          %s395 = scalar_lea.vmem %s5, %s394
        $region77: #{tpu_custom_call.1} parent=15 // pred_fallthru
          _
        // Predicated region
        $region78: #{tpu_custom_call.1} parent=15 // pred_check
          %p396 = pneg %p221
        $region79: #{tpu_custom_call.1} parent=15 // pred_check_branch
          %398 = sbr.rel (%p396) target = $region81
        $region80: #{tpu_custom_call.1} parent=15 // pred_region
          %p399 = scmp.lt.s32.totalorder %s30, 1
          %s400 = scalar_select %p399, %s30, 1
          %s401 = scalar_lea.vmem %s6, %s400
        $region81: #{tpu_custom_call.1} parent=15 // pred_fallthru
          _
      $region16: #{tpu_custom_call.1} parent=5 // pred_fallthru
        _
      %p402 = scmp.le.s32.totalorder 1, %s22
      %p403 = scmp.lt.s32.totalorder %s22, 9
      %p404 = pnand %p402, %p403
      %p405 = pneg %p404
      // Predicated region
      $region82: #{tpu_custom_call.1} parent=5 // pred_check
        _
      $region83: #{tpu_custom_call.1} parent=5 // pred_check_branch
        %407 = sbr.rel (%p404) target = $region85
      $region84: #{tpu_custom_call.1} parent=5 // pred_region
        %s408 = ssub.s32 %s22, 1
        %s409 = sand.u32 %s56, 1
        %s410 = sand.u32 %s56, 1
        %s411 = smul.addr %s410, 8
        %s412 = scalar_lea.vmem [#allocation5], %s411
        // Predicated region
        $region86: #{tpu_custom_call.1} parent=84 // pred_check
          %p413 = pneg %p69
        $region87: #{tpu_custom_call.1} parent=84 // pred_check_branch
          %415 = sbr.rel (%p413) target = $region89
        $region88: #{tpu_custom_call.1} parent=84 // pred_region
          _
        $region89: #{tpu_custom_call.1} parent=84 // pred_fallthru
          _
        %s416 = sand.u32 %s84, 1
        %s417 = scalar_lea.sflag [#allocation7], %s416
        %s418 = sand.u32 %s84, 1
        %s419 = smul.addr %s418, 64
        %s420 = scalar_lea.vmem [#allocation6], %s419
        // Predicated region
        $region90: #{tpu_custom_call.1} parent=84 // pred_check
          %p421 = pneg %p97
        $region91: #{tpu_custom_call.1} parent=84 // pred_check_branch
          %423 = sbr.rel (%p421) target = $region93
        $region92: #{tpu_custom_call.1} parent=84 // pred_region
          %425 = dma.done %s417, 1024
        $region93: #{tpu_custom_call.1} parent=84 // pred_fallthru
          _
        %s426 = sand.u32 %s162, 1
        %s427 = scalar_lea.sflag [#allocation10], %s426
        %s428 = sand.u32 %s162, 1
        %s429 = smul.addr %s428, 8
        %s430 = scalar_lea.vmem [#allocation9], %s429
        // Predicated region
        $region94: #{tpu_custom_call.1} parent=84 // pred_check
          %p431 = pneg %p175
        $region95: #{tpu_custom_call.1} parent=84 // pred_check_branch
          %433 = sbr.rel (%p431) target = $region97
        $region96: #{tpu_custom_call.1} parent=84 // pred_region
          %435 = dma.done %s427, 128
        $region97: #{tpu_custom_call.1} parent=84 // pred_fallthru
          _
        %s436 = sand.u32 %s56, 1
        %s437 = sand.u32 %s56, 1
        %s438 = smul.addr %s437, 8
        %s439 = scalar_lea.vmem [#allocation5], %s438
        %p440 = pneg %p69
        %p441 = pneg %p66
        %s442 = sand.u32 %s84, 1
        %s443 = scalar_lea.sflag [#allocation7], %s442
        %s444 = sand.u32 %s84, 1
        %s445 = smul.addr %s444, 64
        %s446 = scalar_lea.vmem [#allocation6], %s445
        %p447 = pneg %p97
        %p448 = pneg %p94
        %p449 = scmp.lt.s32.totalorder %s34, 1
        %s450 = scalar_select %p449, %s34, 1
        %s451 = smul.addr %s450, 4
        %s452 = scalar_lea.vmem %s2, %s451
        %p453 = pneg %p123
        %p454 = pneg %p120
        %s455 = smul.u32 2, %s32
        %p456 = scmp.lt.s32.totalorder %s455, 3
        %s457 = scalar_select %p456, %s455, 3
        %s458 = smul.addr %s457, 8
        %s459 = scalar_lea.vmem %s3, %s458
        %p460 = pneg %p149
        %p461 = pneg %p146
        %s462 = sand.u32 %s162, 1
        %s463 = scalar_lea.sflag [#allocation10], %s462
        %s464 = sand.u32 %s162, 1
        %s465 = smul.addr %s464, 8
        %s466 = scalar_lea.vmem [#allocation9], %s465
        %p467 = pneg %p175
        %p468 = pneg %p172
        %p469 = scmp.lt.s32.totalorder %s33, 1
        %s470 = scalar_select %p469, %s33, 1
        %s471 = scalar_lea.vmem %s5, %s470
        %p472 = pneg %p201
        %p473 = pneg %p198
        %p474 = scmp.lt.s32.totalorder %s33, 1
        %s475 = scalar_select %p474, %s33, 1
        %s476 = scalar_lea.vmem %s6, %s475
        %p477 = pneg %p227
        %p478 = pneg %p224
        %p479 = pneg %p255
        %p480 = pneg %p252
        %s481 = sand.u32 %s242, 1
        %s482 = scalar_lea.sflag [#allocation8], %s481
        %s483 = sand.u32 %s242, 1
        %s484 = smul.addr %s483, 8
        %s485 = scalar_lea.vmem [#allocation11], %s484
        %s486 = smul.u32 2, %s32
        %s487 = smul.u32 16, %s33
        %p488 = scmp.lt.s32.totalorder %s34, 1
        %s489 = scalar_select %p488, %s34, 1
        %s490 = smul.addr %s489, 4
        %s491 = scalar_lea.vmem %s2, %s490
        %s492 = smul.u32 2, %s32
        %p493 = scmp.lt.s32.totalorder %s492, 3
        %s494 = scalar_select %p493, %s492, 3
        %s495 = smul.addr %s494, 8
        %s496 = scalar_lea.vmem %s3, %s495
        %s497 = smul.u32 2, %s32
        %p498 = scmp.lt.s32.totalorder %s33, 1
        %s499 = scalar_select %p498, %s33, 1
        %s500 = scalar_lea.vmem %s5, %s499
        %p501 = scmp.lt.s32.totalorder %s33, 1
        %s502 = scalar_select %p501, %s33, 1
        %s503 = scalar_lea.vmem %s6, %s502
        %s504 = smul.u32 2, %s32
        %p505 = scmp.eq.s32.totalorder %s34, 0
        // Predicated region
        $region98: #{tpu_custom_call.1} parent=84 // pred_check
          %p506 = pneg %p505
        $region99: #{tpu_custom_call.1} parent=84 // pred_check_branch
          %508 = sbr.rel (%p506) target = $region101
        $region100: #{tpu_custom_call.1} parent=84 // pred_region
          %509 = vst [vmem:[#allocation2] sm:$0xff] 0.0
          %510 = vst [vmem:[#allocation2 + $0x8] sm:$0xff] 0.0
          %511 = vst [vmem:[#allocation3] sm:$0xff] 0.0
          %512 = vst [vmem:[#allocation4] sm:$0xff] 0.0
        $region101: #{tpu_custom_call.1} parent=84 // pred_fallthru
          _
        %v513 = vld [vmem:[%s420] sm:$0xf]
        %v514 = vld [vmem:[%s420 + $0x4] sm:$0xf]
        %v515 = vld [vmem:[%s420 + $0x8] sm:$0xf]
        %v516 = vld [vmem:[%s420 + $0xc] sm:$0xf]
        %v517 = vld [vmem:[%s420 + $0x10] sm:$0xf]
        %v518 = vld [vmem:[%s420 + $0x14] sm:$0xf]
        %v519 = vld [vmem:[%s420 + $0x18] sm:$0xf]
        %v520 = vld [vmem:[%s420 + $0x1c] sm:$0xf]
        %v521 = vld [vmem:[%s420 + $0x20] sm:$0xf]
        %v522 = vld [vmem:[%s420 + $0x24] sm:$0xf]
        %v523 = vld [vmem:[%s420 + $0x28] sm:$0xf]
        %v524 = vld [vmem:[%s420 + $0x2c] sm:$0xf]
        %v525 = vld [vmem:[%s420 + $0x30] sm:$0xf]
        %v526 = vld [vmem:[%s420 + $0x34] sm:$0xf]
        %v527 = vld [vmem:[%s420 + $0x38] sm:$0xf]
        %v528 = vld [vmem:[%s420 + $0x3c] sm:$0xf]
        %v529 = vld [vmem:[#allocation2] sm:$0xff]
        %v530 = vld [vmem:[#allocation2 + $0x8] sm:$0xff]
        %v531 = vld [vmem:[%s412] sm:$0xf]
        %v532 = vld [vmem:[%s412 + $0x4] sm:$0xf]
        %v535 = vunpack.c.l.b16 %v531
        %v536 = vunpack.c.l.b16 %v532
        %v537 = vpack.c.b16 %v536, %v535
        %v555 = vunpack.c.l.b16 %v513
        %v556 = vunpack.c.l.b16 %v514
        %v557 = vunpack.c.l.b16 %v515
        %v558 = vunpack.c.l.b16 %v516
        %v559 = vunpack.c.l.b16 %v517
        %v560 = vunpack.c.l.b16 %v518
        %v561 = vunpack.c.l.b16 %v519
        %v562 = vunpack.c.l.b16 %v520
        %v563 = vunpack.c.l.b16 %v521
        %v564 = vunpack.c.l.b16 %v522
        %v565 = vunpack.c.l.b16 %v523
        %v566 = vunpack.c.l.b16 %v524
        %v567 = vunpack.c.l.b16 %v525
        %v568 = vunpack.c.l.b16 %v526
        %v569 = vunpack.c.l.b16 %v527
        %v570 = vunpack.c.l.b16 %v528
        %v571 = vpack.c.b16 %v556, %v555
        %v572 = vpack.c.b16 %v558, %v557
        %v573 = vpack.c.b16 %v560, %v559
        %v574 = vpack.c.b16 %v562, %v561
        %v575 = vpack.c.b16 %v564, %v563
        %v576 = vpack.c.b16 %v566, %v565
        %v577 = vpack.c.b16 %v568, %v567
        %v578 = vpack.c.b16 %v570, %v569
        %587 = vmatpush.bf16.xpose.msra.mxu0 %v578
        %588 = vmatpush.bf16.xpose.msra.mxu0 %v577
        %589 = vmatpush.bf16.xpose.msra.mxu0 %v576
        %590 = vmatpush.bf16.xpose.msra.mxu0 %v575
        %591 = vmatpush.bf16.xpose.msra.mxu0 %v574
        %592 = vmatpush.bf16.xpose.msra.mxu0 %v573
        %593 = vmatpush.bf16.xpose.msra.mxu0 %v572
        %594 = vmatpush.bf16.xpose.msra.mxu0 %v571
        %595 = vmatmul.bf16.gmra.mxu0 %v537
        %v596 = vpop.f32.mrf.mxu0
        %v597 = vadd.f32 0.0, %v596
        %v598 = vpop.f32.mrf.mxu0
        %v599 = vadd.f32 0.0, %v598
        %600 = vdwg.mxu0
        %v601 = vadd.f32 %v529, %v597
        %v602 = vadd.f32 %v530, %v599
        %603 = vst [vmem:[#allocation2] sm:$0xff] %v601
        %604 = vst [vmem:[#allocation2 + $0x8] sm:$0xff] %v602
        %v605 = vld [vmem:[#allocation3] sm:$0xff]
        %v606 = vld [vmem:[%s491] sm:$0xf]
        %607 = vmatpush.bf16.xpose.msra.mxu0 %v578
        %608 = vmatpush.bf16.xpose.msra.mxu0 %v577
        %609 = vmatpush.bf16.xpose.msra.mxu0 %v576
        %610 = vmatpush.bf16.xpose.msra.mxu0 %v575
        %611 = vmatpush.bf16.xpose.msra.mxu0 %v574
        %612 = vmatpush.bf16.xpose.msra.mxu0 %v573
        %613 = vmatpush.bf16.xpose.msra.mxu0 %v572
        %614 = vmatpush.bf16.xpose.msra.mxu0 %v571
        %615 = vmatmul.bf16.gmra.mxu0 %v606
        %v616 = vpop.f32.mrf.mxu0
        %v617 = vadd.f32 0.0, %v616
        %v618 = vpop.f32.mrf.mxu0
        %619 = vdwg.mxu0
        %v620 = vadd.f32 %v605, %v617
        %621 = vst [vmem:[#allocation3] sm:$0xff] %v620
        %v622 = vunpack.c.l.bf16 %v513
        %v623 = vunpack.c.l.bf16 %v514
        %v624 = vunpack.c.l.bf16 %v515
        %v625 = vunpack.c.l.bf16 %v516
        %v626 = vunpack.c.l.bf16 %v517
        %v627 = vunpack.c.l.bf16 %v518
        %v628 = vunpack.c.l.bf16 %v519
        %v629 = vunpack.c.l.bf16 %v520
        %v630 = vunpack.c.l.bf16 %v521
        %v631 = vunpack.c.l.bf16 %v522
        %v632 = vunpack.c.l.bf16 %v523
        %v633 = vunpack.c.l.bf16 %v524
        %v634 = vunpack.c.l.bf16 %v525
        %v635 = vunpack.c.l.bf16 %v526
        %v636 = vunpack.c.l.bf16 %v527
        %v637 = vunpack.c.l.bf16 %v528
        %v638 = vld [vmem:[#allocation4] sm:$0xff]
        %v639 = vmul.f32 %v622, %v622
        %v640 = vmul.f32 %v623, %v623
        %v641 = vmul.f32 %v624, %v624
        %v642 = vmul.f32 %v625, %v625
        %v643 = vmul.f32 %v626, %v626
        %v644 = vmul.f32 %v627, %v627
        %v645 = vmul.f32 %v628, %v628
        %v646 = vmul.f32 %v629, %v629
        %v647 = vmul.f32 %v630, %v630
        %v648 = vmul.f32 %v631, %v631
        %v649 = vmul.f32 %v632, %v632
        %v650 = vmul.f32 %v633, %v633
        %v651 = vmul.f32 %v634, %v634
        %v652 = vmul.f32 %v635, %v635
        %v653 = vmul.f32 %v636, %v636
        %v654 = vmul.f32 %v637, %v637
        %655 = vmatpush.xpose.msra.mxu0 %v654
        %656 = vmatpush.xpose.msra.mxu0 %v653
        %657 = vmatpush.xpose.msra.mxu0 %v652
        %658 = vmatpush.xpose.msra.mxu0 %v651
        %659 = vmatpush.xpose.msra.mxu0 %v650
        %660 = vmatpush.xpose.msra.mxu0 %v649
        %661 = vmatpush.xpose.msra.mxu0 %v648
        %662 = vmatpush.xpose.msra.mxu0 %v647
        %663 = vmatpush.xpose.msra.mxu0 %v646
        %664 = vmatpush.xpose.msra.mxu0 %v645
        %665 = vmatpush.xpose.msra.mxu0 %v644
        %666 = vmatpush.xpose.msra.mxu0 %v643
        %667 = vmatpush.xpose.msra.mxu0 %v642
        %668 = vmatpush.xpose.msra.mxu0 %v641
        %669 = vmatpush.xpose.msra.mxu0 %v640
        %670 = vmatpush.xpose.msra.mxu0 %v639
        %671 = vmatmul.f32.gmra.mxu0 1.0
        %v672 = vpop.f32.mrf.mxu0
        %v673 = vadd.f32 0.0, %v672
        %674 = vdwg.mxu0
        %v675 = vadd.f32 %v638, %v673
        %676 = vst [vmem:[#allocation4] sm:$0xff] %v675
        %p677 = scmp.eq.s32.totalorder %s34, 1
        // Predicated region
        $region102: #{tpu_custom_call.1} parent=84 // pred_check
          %p678 = pneg %p677
        $region103: #{tpu_custom_call.1} parent=84 // pred_check_branch
          %680 = sbr.rel (%p678) target = $region105
        $region104: #{tpu_custom_call.1} parent=84 // pred_region
          %v681 = vld [vmem:[%s430] sm:$0xff]
          %v682 = vld [vmem:[#allocation3] sm:$0xff]
          %v683 = vmul.f32 %v681, %v682
          %v684 = vrot.slane %v683, 4
          %v685 = vadd.f32 %v683, %v684
          %v686 = vrot.slane %v685, 2
          %v687 = vadd.f32 %v685, %v686
          %v688 = vrot.slane %v687, 1
          %v689 = vadd.f32 %v687, %v688
          %v690 = vld [vmem:[#allocation4] sm:$0x1]
          %v691 = vmul.f32 %v689, 2.0
          %v692 = vadd.f32 %v690, %v691
          %v693 = vld [vmem:[%s503] sm:$0x1]
          %v694 = vadd.f32 %v692, %v693
          %v695 = vld [vmem:[%s500] sm:$0x1]
          %v696 = vrsqrt.pop %v694
          %v697 = vmul.f32 %v696, %v694
          %v698 = vmul.f32 %v697, %v696
          %v699 = vmul.f32 0.5, %v698
          %v700 = vsub.f32 1.5, %v699
          %v701 = vmul.f32 %v696, %v700
          %vm702 = vweird.f32 %v694
          %vm703 = vweird.f32 %v696
          %vm704 = vmor %vm702, %vm703
          %v705 = vsel %vm704, %v696, %v701
          %v706 = vmul.f32 %v695, %v705
          %v707 = vld [vmem:[%s496] sm:$0xff]
          %v708 = vld [vmem:[%s496 + $0x8] sm:$0xff]
          %vm709 = vcmask 64512
          %v711 = vsel %vm709, %v707, 0
          %v714 = vsel %vm709, %v708, 0
          %716 = vmatpush.msra.mxu0 0.0
          %717 = vmatpush.msra.mxu0 0.0
          %718 = vmatpush.msra.mxu0 0.0
          %719 = vmatpush.msra.mxu0 0.0
          %720 = vmatpush.msra.mxu0 0.0
          %721 = vmatpush.msra.mxu0 0.0
          %722 = vmatpush.msra.mxu0 0.0
          %723 = vmatpush.msra.mxu0 0.0
          %724 = vmatpush.msra.mxu0 0.0
          %725 = vmatpush.msra.mxu0 0.0
          %726 = vmatpush.msra.mxu0 0.0
          %727 = vmatpush.msra.mxu0 0.0
          %728 = vmatpush.msra.mxu0 0.0
          %729 = vmatpush.msra.mxu0 0.0
          %730 = vmatpush.msra.mxu0 0.0
          %731 = vmatpush.msra.mxu0 %v681
          %732 = vmatmul.f32.gmra.mxu0 %v711
          %v733 = vpop.f32.mrf.mxu0
          %v734 = vadd.f32 0.0, %v733
          %735 = vmatmul.f32.gmra.mxu0 %v714
          %v736 = vpop.f32.mrf.mxu0
          %v737 = vadd.f32 0.0, %v736
          %738 = vdwg.mxu0
          %v739 = vsub.f32 %v706, 1.0
          %v740 = vld [vmem:[#allocation2] sm:$0xff]
          %v741 = vld [vmem:[#allocation2 + $0x8] sm:$0xff]
          %v743 = vperm.slane %v739, 0
          %v745 = vmul.f32 %v743, %v740
          %v746 = vmul.f32 %v743, %v741
          %v748 = vperm.slane %v706, 0
          %v750 = vmul.f32 %v748, %v734
          %v751 = vmul.f32 %v748, %v737
          %v752 = vadd.f32 %v745, %v750
          %v753 = vadd.f32 %v746, %v751
          %v754 = vpack.c.bf16 %v752, %v752
          %v755 = vpack.c.bf16 %v753, %v753
          %756 = vst [vmem:[%s485] sm:$0xf] %v754
          %757 = vst [vmem:[%s485 + $0x4] sm:$0xf] %v755
        $region105: #{tpu_custom_call.1} parent=84 // pred_fallthru
          _
        %s758 = sand.u32 %s242, 1
        %s759 = scalar_lea.sflag [#allocation8], %s758
        %s760 = sand.u32 %s242, 1
        %s761 = smul.addr %s760, 8
        %s762 = scalar_lea.vmem [#allocation11], %s761
        // Predicated region
        $region106: #{tpu_custom_call.1} parent=84 // pred_check
          %p763 = pneg %p252
        $region107: #{tpu_custom_call.1} parent=84 // pred_check_branch
          %765 = sbr.rel (%p763) target = $region109
        $region108: #{tpu_custom_call.1} parent=84 // pred_region
          %s766 = smul.u32 2, %s32
          %768 = vsyncadd %s759, 0
          %s769 = smul.addr %s766, 2
          %s770 = sadd.s32 %s33, %s769
          %s771 = smul.addr %s770, 4
          %s772 = scalar_lea.hbm %s7, %s771
          %s773 = sshll.u32 %s762, 4
          %s774 = int_to_ptr.vmem [resolvable:$true] %s773
          %s775 = sshll.u32 %s772, 4
          %s776 = int_to_ptr.hbm [resolvable:$true] %s775
          %781 = dma.vmem_to_hbm [thread:$0]  %s774, 128, %s776, %s759, 64, 128, 4
        $region109: #{tpu_custom_call.1} parent=84 // pred_fallthru
          _
      $region85: #{tpu_custom_call.1} parent=5 // pred_fallthru
        _
      %p782 = scmp.le.s32.totalorder 2, %s22
      // Predicated region
      $region110: #{tpu_custom_call.1} parent=5 // pred_check
        %p783 = pneg %p782
      $region111: #{tpu_custom_call.1} parent=5 // pred_check_branch
        %785 = sbr.rel (%p783) target = $region113
      $region112: #{tpu_custom_call.1} parent=5 // pred_region
        %s786 = ssub.s32 %s22, 2
        // Predicated region
        $region114: #{tpu_custom_call.1} parent=112 // pred_check
          %p787 = pneg %p258
        $region115: #{tpu_custom_call.1} parent=112 // pred_check_branch
          %789 = sbr.rel (%p787) target = $region117
        $region116: #{tpu_custom_call.1} parent=112 // pred_region
          %s790 = sand.u32 %s243, 1
          %s791 = scalar_lea.sflag [#allocation8], %s790
          %s792 = sand.u32 %s243, 1
          %s793 = smul.addr %s792, 8
          %s794 = scalar_lea.vmem [#allocation11], %s793
          %796 = dma.done %s791, 128
        $region117: #{tpu_custom_call.1} parent=112 // pred_fallthru
          _
      $region113: #{tpu_custom_call.1} parent=5 // pred_fallthru
        _
    $region6: #{tpu_custom_call.1} parent=1 // loop_footer
      %s26 = sadd.s32 1, %s22
    $region7: #{tpu_custom_call.1} parent=1 // loop_footer_branch
      %21 = sbr.rel target = $region3
    $region8: #{tpu_custom_call.1} parent=1 // loop_exit
      _
    %797 = vsyncpa [#allocation7], 1
    %s798 = scalar_lea.sflag [#allocation7], 1
    %799 = vsyncpa %s798, 1
    %800 = vsyncpa [#allocation10], 1
    %s801 = scalar_lea.sflag [#allocation10], 1
    %802 = vsyncpa %s801, 1
    %803 = vsyncpa [#allocation8], 1
    %s804 = scalar_lea.sflag [#allocation8], 1
    %805 = vsyncpa %s804, 1

</llo_original>
